<compile_context>
chip_gen: v5e
topology: v5e:2x2
jax: 0.10.0
libtpu: 0.0.40
codegen_flags: <defaults>
</compile_context>

<pallas_src>
import functools

import jax
import jax.numpy as jnp
from jax.experimental import pallas as pl
from jax.experimental.pallas import tpu as pltpu


def _round_up(n, m):
    return ((n + m - 1) // m) * m


def _linear_sigmoid_kernel(x_ref, w_ref, b_ref, o_ref):
    # x_ref: (TB, D) native dtype, w_ref: (1, D) same dtype, b_ref: (1,) f32 SMEM,
    # o_ref: (1, TB) lane-dense output row.
    logits = jax.lax.dot_general(
        w_ref[...], x_ref[...],
        dimension_numbers=(((1,), (1,)), ((), ())),   # contract D on both sides
        preferred_element_type=jnp.float32,
    )                                                  # (1, TB) f32
    logits = logits + b_ref[0]
    # sigmoid(z) = 1 / (1 + exp(-z))  (exact; exp goes to the EUP slot)
    o_ref[...] = (1.0 / (1.0 + jnp.exp(-logits))).astype(o_ref.dtype)


@functools.partial(jax.jit, static_argnames=("target_block_bytes",))
def linear_classifier_forward(x, w, b, *, target_block_bytes=8 * 1024 * 1024):
    """x: (B, D), w: (1, D) (PyTorch nn.Linear layout), b: (1,) -> (B, 1)."""
    B, D = x.shape
    dtype = x.dtype
    itemsize = jnp.dtype(dtype).itemsize

    # Pick the batch tile: ~target_block_bytes per x block. When tiling, keep it
    # a multiple of 128 so the lane-dense output block is 128-aligned; when the
    # whole batch fits in one block, just round the batch up to a sublane multiple.
    rows_per_target = max(1, target_block_bytes // (D * itemsize))
    if rows_per_target >= B:
        tb = _round_up(B, 8)
    else:
        tb = max(128, (rows_per_target // 128) * 128)
    b_pad = _round_up(B, tb)
    grid = b_pad // tb

    # Only materialize a padded copy of x when the batch doesn't divide the tile.
    x_p = x if b_pad == B else jnp.pad(x, ((0, b_pad - B), (0, 0)))
    w_row = w.reshape(1, D).astype(dtype)           # lane-dense weight row
    bias = b.reshape((1,)).astype(jnp.float32)      # scalar bias -> SMEM

    # VMEM budget: 2x double-buffered x blocks + resident weight + output rows
    # + headroom. Cap below the smallest physical VMEM (v7x: 64 MiB / TC).
    block_bytes = tb * D * itemsize
    vmem_limit = 2 * block_bytes + D * itemsize + 2 * tb * itemsize + (4 << 20)
    vmem_limit = int(min(max(vmem_limit, 16 << 20), 60 << 20))

    out_row = pl.pallas_call(
        _linear_sigmoid_kernel,
        out_shape=jax.ShapeDtypeStruct((1, b_pad), dtype),
        grid=(grid,),
        in_specs=[
            pl.BlockSpec((tb, D), lambda i: (i, 0)),            # stream x over batch
            pl.BlockSpec((1, D), lambda i: (0, 0)),             # weight, resident
            pl.BlockSpec(memory_space=pltpu.MemorySpace.SMEM),  # bias scalar
        ],
        out_specs=pl.BlockSpec((1, tb), lambda i: (0, i)),      # lane-dense output
        compiler_params=pltpu.CompilerParams(
            dimension_semantics=("parallel",),
            vmem_limit_bytes=vmem_limit,
        ),
    )(x_p, w_row, bias)

    # (1, B_pad) -> (B, 1), dropping batch padding.
    return out_row.reshape(b_pad, 1)[:B]


if __name__ == "__main__":
    key = jax.random.PRNGKey(0)
    kx, kw, kb = jax.random.split(key, 3)

    batch = 4
    input_size = 32

    # Deterministic parameter init (matches nn.Linear fan_in uniform bound).
    bound = 1.0 / (input_size ** 0.5)
    w = jax.random.uniform(kw, (1, input_size), jnp.float32, -bound, bound)
    b = jax.random.uniform(kb, (1,), jnp.float32, -bound, bound)
    x = jax.random.normal(kx, (batch, input_size), jnp.float32)

    out = linear_classifier_forward(x, w, b)
    out = jax.block_until_ready(out)

    # Reference check in plain JAX.
    ref = jax.nn.sigmoid(x @ w.T + b)
    assert out.shape == (batch, 1), out.shape
    assert jnp.allclose(out, ref, atol=1e-5, rtol=1e-5), float(
        jnp.max(jnp.abs(out - ref)))
    print("KERNEL_OK")
</pallas_src>

<mosaic_0001>
module attributes {stable_mosaic.version = 11 : i64} {
  func.func @_linear_sigmoid_kernel(%arg0: i32, %arg1: memref<8x32xf32, #tpu.memory_space<vmem>>, %arg2: memref<1x32xf32, #tpu.memory_space<vmem>>, %arg3: memref<1xf32, #tpu.memory_space<smem>>, %arg4: memref<1x8xf32, #tpu.memory_space<vmem>>) attributes {dimension_semantics = [#tpu.dimension_semantics<parallel>], iteration_bounds = array<i64: 1>, scalar_prefetch = 0 : i64, scratch_operands = 0 : i64, tpu.core_type = #tpu.core_type<tc>, window_params = [{transform_indices = @transform_0, window_bounds = array<i64: 8, 32>}, {pipeline_mode = #tpu.pipeline_mode<synchronous>, transform_indices = @transform_1, window_bounds = array<i64: 1, 32>}, {transform_indices = @transform_2, window_bounds = array<i64: 1>}, {transform_indices = @transform_3, window_bounds = array<i64: 1, 8>}]} {
    %c0 = arith.constant 0 : index
    %c0_0 = arith.constant 0 : index
    %0 = vector.load %arg2[%c0, %c0_0] : memref<1x32xf32, #tpu.memory_space<vmem>>, vector<1x32xf32>
    %c0_1 = arith.constant 0 : index
    %c0_2 = arith.constant 0 : index
    %1 = vector.load %arg1[%c0_1, %c0_2] : memref<8x32xf32, #tpu.memory_space<vmem>>, vector<8x32xf32>
    %cst = arith.constant dense<0.000000e+00> : vector<1x8xf32>
    %2 = tpu.matmul %0, %1, %cst {dimension_numbers = #tpu.dot_dimension_numbers<[1], [1], [0], [0], [0, 0, 1, 0], [], []>} : vector<1x32xf32>, vector<8x32xf32>, vector<1x8xf32> -> vector<1x8xf32>
    %c0_3 = arith.constant 0 : index
    %3 = memref.load %arg3[%c0_3] : memref<1xf32, #tpu.memory_space<smem>>
    %4 = vector.broadcast %3 : f32 to vector<1x8xf32>
    %5 = arith.addf %2, %4 : vector<1x8xf32>
    %cst_4 = arith.constant 0.000000e+00 : f32
    %6 = vector.broadcast %cst_4 : f32 to vector<1x8xf32>
    %7 = arith.subf %6, %5 : vector<1x8xf32>
    %8 = math.exp %7 : vector<1x8xf32>
    %cst_5 = arith.constant 1.000000e+00 : f32
    %9 = vector.broadcast %cst_5 : f32 to vector<1x8xf32>
    %10 = arith.addf %9, %8 : vector<1x8xf32>
    %cst_6 = arith.constant 1.000000e+00 : f32
    %11 = vector.broadcast %cst_6 : f32 to vector<1x8xf32>
    %12 = arith.divf %11, %10 : vector<1x8xf32>
    %c0_7 = arith.constant 0 : index
    %c0_8 = arith.constant 0 : index
    %13 = vector.load %arg4[%c0_7, %c0_8] : memref<1x8xf32, #tpu.memory_space<vmem>>, vector<1x8xf32>
    tpu.vector_store %arg4[%c0_7, %c0_8], %12 {strides = array<i32>} : memref<1x8xf32, #tpu.memory_space<vmem>>, vector<1x8xf32>,
    return
  }
  func.func @transform_0(%arg0: i32) -> (i32, i32) {
    %c0_i32 = arith.constant 0 : i32
    %c0_i32_0 = arith.constant 0 : i32
    return %arg0, %c0_i32 : i32, i32
  }
  func.func @transform_1(%arg0: i32) -> (i32, i32) {
    %c0_i32 = arith.constant 0 : i32
    %c0_i32_0 = arith.constant 0 : i32
    %c0_i32_1 = arith.constant 0 : i32
    return %c0_i32, %c0_i32_0 : i32, i32
  }
  func.func @transform_2(%arg0: i32) -> i32 {
    %c0_i32 = arith.constant 0 : i32
    %c0_i32_0 = arith.constant 0 : i32
    return %c0_i32 : i32
  }
  func.func @transform_3(%arg0: i32) -> (i32, i32) {
    %c0_i32 = arith.constant 0 : i32
    %c0_i32_0 = arith.constant 0 : i32
    return %c0_i32, %arg0 : i32, i32
  }
}

</mosaic_0001>

<llo_original>
// kernel: linear_classifier_forward.1
$region0: #{linear_classifier_forward.1}
  #allocation0 [shape = 'u32[]', space=smem, size = 0x4, offset = 0x4, fixed_abs, tag = 'smem constant byte address 0x4 - core index']
  #allocation1 [shape = 'u32[72,128]{1,0:T(1,128)}', space=vmem, size = 0x9000, scoped, tag = 'internal scratch']
  #allocation2 [shape = 'f32[1]{0:T(128)S(6)}', space=smem, size = 0x200, scoped, tag = 'scoped memory for linear_classifier_forward.1']
  %s0 = inlined_call_operand.vmem [shape: f32[8,32], index: 0, kind: input, shape index: {}]
  %s1 = inlined_call_operand.vmem [shape: f32[1,32], index: 1, kind: input, shape index: {}]
  %s2 = inlined_call_operand.<no memory space> [shape: f32[1], index: 2, kind: input, shape index: {}]
  %s3 = inlined_call_operand.vmem [shape: f32[1,8], index: 3, kind: output, shape index: {}]
  %s4 = sld [smem:[#allocation0]]
  $region22: #{linear_classifier_forward.1} parent=0
    _
  %s6 = ssub.s32 1, %s4
  %s7 = scalar_select 0, %s6, %s4
  %8 = sst [smem:[#allocation2]] %s2
  // Predicated region
  $region2: #{linear_classifier_forward.1} parent=0 // pred_check
    _
  $region3: #{linear_classifier_forward.1} parent=0 // pred_check_branch
    %10 = sbr.rel (0) target = $region5
  $region4: #{linear_classifier_forward.1} parent=0 // pred_region
    _
  $region5: #{linear_classifier_forward.1} parent=0 // pred_fallthru
    _
  // Predicated region
  $region6: #{linear_classifier_forward.1} parent=0 // pred_check
    _
  $region7: #{linear_classifier_forward.1} parent=0 // pred_check_branch
    %12 = sbr.rel (0) target = $region9
  $region8: #{linear_classifier_forward.1} parent=0 // pred_region
    _
  $region9: #{linear_classifier_forward.1} parent=0 // pred_fallthru
    _
  // Predicated region
  $region10: #{linear_classifier_forward.1} parent=0 // pred_check
    _
  $region11: #{linear_classifier_forward.1} parent=0 // pred_check_branch
    %14 = sbr.rel (0) target = $region13
  $region12: #{linear_classifier_forward.1} parent=0 // pred_region
    _
  $region13: #{linear_classifier_forward.1} parent=0 // pred_fallthru
    _
  %v15 = vld [vmem:[%s1] sm:$0x1]
  %v16 = vld [vmem:[%s0] sm:$0xff]
  %s17 = sld [smem:[#allocation2]]
  %v18 = vstv %s17
  %vm19 = vcmask 261120
  %v21 = vsel %vm19, %v15, 0
  %v24 = vsel %vm19, %v16, 0
  %26 = vmatpush.xpose.msra.mxu0 0.0
  %27 = vmatpush.xpose.msra.mxu0 0.0
  %28 = vmatpush.xpose.msra.mxu0 0.0
  %29 = vmatpush.xpose.msra.mxu0 0.0
  %30 = vmatpush.xpose.msra.mxu0 0.0
  %31 = vmatpush.xpose.msra.mxu0 0.0
  %32 = vmatpush.xpose.msra.mxu0 0.0
  %33 = vmatpush.xpose.msra.mxu0 0.0
  %34 = vmatpush.xpose.msra.mxu0 0.0
  %35 = vmatpush.xpose.msra.mxu0 0.0
  %36 = vmatpush.xpose.msra.mxu0 0.0
  %37 = vmatpush.xpose.msra.mxu0 0.0
  %38 = vmatpush.xpose.msra.mxu0 0.0
  %39 = vmatpush.xpose.msra.mxu0 0.0
  %40 = vmatpush.xpose.msra.mxu0 0.0
  %41 = vmatpush.xpose.msra.mxu0 %v24
  %42 = vmatmul.f32.gmra.mxu0 %v21
  %v43 = vpop.f32.mrf.mxu0
  %v44 = vadd.f32 %v18, %v43
  %45 = vdwg.mxu0
  %v46 = vsub.f32 0.0, %v44
  %v47 = vmul.f32 %v46, 1.442695
  %v48 = vpow.pop %v47
  %v49 = vadd.f32 %v48, 1.0
  %v50 = vrcp.pop %v49
  %v51 = vmul.f32 %v49, %v50
  %v52 = vsub.f32 1.0, %v51
  %v53 = vmul.f32 %v50, %v52
  %v54 = vadd.f32 %v50, %v53
  %vm55 = vweird.f32 %v49
  %vm56 = vweird.f32 %v50
  %vm57 = vmor %vm55, %vm56
  %v58 = vsel %vm57, %v50, %v54
  %v59 = vand.u32 2147483647, %v49
  %vm60 = vcmp.eq.f32.partialorder %v59, 8.507059e+37
  %v61 = vand.u32 %v49, 2147483648
  %v62 = vor.u32 1.1754944e-38, %v61
  %v63 = vsel %vm60, %v62, %v58
  %v64 = vmul.f32 1.0, %v63
  %vm65 = vcmask 57344
  %66 = vst.msk [vmem:[%s3] sm:$0x1] %vm65, %v64
  // Predicated region
  $region14: #{linear_classifier_forward.1} parent=0 // pred_check
    _
  $region15: #{linear_classifier_forward.1} parent=0 // pred_check_branch
    %68 = sbr.rel (0) target = $region17
  $region16: #{linear_classifier_forward.1} parent=0 // pred_region
    _
  $region17: #{linear_classifier_forward.1} parent=0 // pred_fallthru
    _
  // Predicated region
  $region18: #{linear_classifier_forward.1} parent=0 // pred_check
    _
  $region19: #{linear_classifier_forward.1} parent=0 // pred_check_branch
    %70 = sbr.rel (0) target = $region21
  $region20: #{linear_classifier_forward.1} parent=0 // pred_region
    _
  $region21: #{linear_classifier_forward.1} parent=0 // pred_fallthru
    _

</llo_original>
